<compile_context>
chip_gen: v7x
topology: tpu7x:2x2x1
jax: 0.10.0
libtpu: 0.0.40
codegen_flags: <defaults>
</compile_context>

<pallas_src>
import functools

import jax
import jax.numpy as jnp
from jax import lax
from jax.experimental import pallas as pl
from jax.experimental.pallas import tpu as pltpu


# --------------------------------------------------------------------------
# Pallas kernel: one batch tile, lane-dense (B_t, H, W*C) layout
# --------------------------------------------------------------------------
def _invres_kernel(x_ref, w1bd_ref, s1t_ref, b1t_ref, kdw9_ref, s2t_ref,
                   b2t_ref, w3sbd_ref, s3t_ref, b3t_ref, pperm_ref, o_ref,
                   *, inner):
    """Fused ShuffleNetV2 InvertedResidual (stride==1) for one batch tile.

    x_ref     : (B_t, H, W*C)      lane-dense NHWC input (W*C on lanes)
    w1bd_ref  : (W*C, W*inner)     1x1 conv #1, W-block-diagonal (x1 rows zero)
    kdw9_ref  : (9, W*inner)       depthwise 3x3 taps, W-boundary taps zeroed
    w3sbd_ref : (W*inner, W*C)     1x1 conv #2, W-block-diagonal, columns
                                   scattered to odd (shuffled) channels
    s*/b*     : (1, W*inner|W*C)   folded BN scale / bias (zero on even lanes
                                   for s3t / b3t)
    pperm_ref : (W*C, W*C)         0/1 matrix: input ch i -> output ch 2i
    o_ref     : (B_t, H, W*C)      shuffled output (even ch = x1, odd ch = z)
    """
    Bt, H, WC = x_ref.shape
    M = Bt * H
    x = x_ref[...].reshape(M, WC)                           # free reshape

    # ---- 1x1 conv #1 + BN + ReLU (MXU, M = B_t*H rows) --------------------
    y = jnp.dot(x, w1bd_ref[...], preferred_element_type=jnp.float32)
    y = jnp.maximum(y * s1t_ref[...] + b1t_ref[...], 0.0)   # (M, W*inner)
    Wi = y.shape[1]

    # ---- depthwise 3x3, stride 1, pad 1, then BN ---------------------------
    # Spatial-W shift = XLU lane rotation.  The W-boundary zero padding is
    # folded into kdw9 (boundary tap weights are zero), so no lane mask.
    slab_l = pltpu.roll(y, inner, axis=1)        # y at column w-1
    slab_r = pltpu.roll(y, Wi - inner, axis=1)   # y at column w+1
    slabs = (slab_l, y, slab_r)

    kdw9 = kdw9_ref[...]                                     # (9, W*inner)
    # Linearity: per-dh lane-weighted sums first, then only 2 row shifts.
    p_rows = []
    for dh in range(3):
        t = slabs[0] * kdw9[3 * dh + 0:3 * dh + 1, :]
        t = t + slabs[1] * kdw9[3 * dh + 1:3 * dh + 2, :]
        t = t + slabs[2] * kdw9[3 * dh + 2:3 * dh + 3, :]
        p_rows.append(t)

    # Spatial-H shift = sublane rotation; zero rows that wrapped across the
    # image (and batch-image) boundary.  Masks built once (hoisted).
    row_h = lax.broadcasted_iota(jnp.int32, (M, Wi), 0) % H
    mask_top = (row_h >= 1).astype(y.dtype)                  # dh=0 reads h-1
    mask_bot = (row_h < H - 1).astype(y.dtype)               # dh=2 reads h+1

    acc = p_rows[1]
    acc = acc + pltpu.roll(p_rows[0], 1, axis=0) * mask_top
    acc = acc + pltpu.roll(p_rows[2], M - 1, axis=0) * mask_bot
    acc = acc * s2t_ref[...] + b2t_ref[...]

    # ---- 1x1 conv #2 + BN + ReLU, scattered to odd output channels --------
    # w3sbd / s3t / b3t are zero on even channels, so even lanes leave the
    # ReLU as exact zeros; this fuses concat([x1, z]) + channel_shuffle(2).
    out = jnp.dot(acc, w3sbd_ref[...], preferred_element_type=jnp.float32)
    out = jnp.maximum(out * s3t_ref[...] + b3t_ref[...], 0.0)  # (M, W*C)

    # ---- x1 passthrough: one MXU matmul against a 0/1 permutation ---------
    out = out + jnp.dot(x, pperm_ref[...], preferred_element_type=jnp.float32)

    o_ref[...] = out.reshape(Bt, H, WC).astype(o_ref.dtype)


def _fused_invres(xw, prep, inner, batch_tile=None):
    """pallas_call wrapper.  xw: (N, H, W*C) lane-dense input."""
    N, H, WC = xw.shape
    bt = N if batch_tile is None else batch_tile
    assert N % bt == 0, "batch must be divisible by batch_tile"

    kernel = functools.partial(_invres_kernel, inner=inner)

    def full(shape):
        nd = len(shape)
        return pl.BlockSpec(shape, lambda n: (0,) * nd)

    arg_order = ('w1bd', 's1t', 'b1t', 'kdw9', 's2t', 'b2t',
                 'w3sbd', 's3t', 'b3t', 'pperm')
    weight_specs = [full(prep[k].shape) for k in arg_order]

    return pl.pallas_call(
        kernel,
        out_shape=jax.ShapeDtypeStruct((N, H, WC), xw.dtype),
        grid_spec=pltpu.PrefetchScalarGridSpec(
            num_scalar_prefetch=0,
            grid=(N // bt,),                      # default: 1 step (bt == N)
            in_specs=[pl.BlockSpec((bt, H, WC), lambda n: (n, 0, 0))]
                     + weight_specs,
            out_specs=pl.BlockSpec((bt, H, WC), lambda n: (n, 0, 0)),
        ),
        compiler_params=pltpu.CompilerParams(
            dimension_semantics=("parallel",)),
    )(xw, *[prep[k] for k in arg_order])


def inverted_residual_stride1_lane_dense(xw, prep, inner, batch_tile=None):
    """Block forward staying in the lane-dense (N, H, W*C) layout.

    Use this when chaining consecutive InvertedResidual blocks so that the
    NCHW <-> lane-dense transposes (pure HBM round-trips) only happen at the
    network boundary.
    """
    return _fused_invres(xw, prep, inner, batch_tile)


# --------------------------------------------------------------------------
# One-time weight re-layout (outside the jitted forward)
# --------------------------------------------------------------------------
def prepare_params(p, W):
    """Re-layout PyTorch-layout weights into the lane-dense kernel layout."""
    m = p['w1_oihw'].shape[0]           # inner channels
    C = 2 * m
    f32 = jnp.float32
    eye_w = jnp.eye(W, dtype=f32)

    # 1x1 conv #1: only the x2 half of the input contributes -> zero top rows.
    w1 = jnp.transpose(p['w1_oihw'][:, :, 0, 0])             # (in m, out m)
    w1e = jnp.concatenate([jnp.zeros((m, m), f32), w1], axis=0)   # (C, m)
    w1bd = jnp.kron(eye_w, w1e)                              # (W*C, W*m)

    # 1x1 conv #2: outputs scattered to odd channels of the shuffled output.
    w3 = jnp.transpose(p['w3_oihw'][:, :, 0, 0])             # (in m, out m)
    w3s = jnp.zeros((m, C), f32).at[:, 1::2].set(w3)         # (m, C)
    w3sbd = jnp.kron(eye_w, w3s)                             # (W*m, W*C)

    # depthwise 3x3 taps, tiled across the W groups, flattened to (9, W*m).
    # The zero padding at the W boundaries is folded into the tap weights so
    # the in-kernel lane rolls need no mask.
    kdw = jnp.transpose(p['wdw_oihw'][:, 0], (1, 2, 0))      # (3, 3, m)
    kdw9 = jnp.tile(kdw, (1, 1, W)).reshape(9, W * m)
    lane_w = jnp.arange(W * m) // m                          # w index per lane
    row_kw = jnp.arange(9) % 3                               # kw per tap row
    keep = ~(((row_kw[:, None] == 0) & (lane_w[None, :] == 0)) |
             ((row_kw[:, None] == 2) & (lane_w[None, :] == W - 1)))
    kdw9 = kdw9 * keep.astype(f32)

    def tile_vec(v, n):
        return jnp.tile(v.reshape(-1), W).reshape(1, n)

    s1t = tile_vec(p['s1'], W * m)
    b1t = tile_vec(p['b1'], W * m)
    s2t = tile_vec(p['s2'], W * m)
    b2t = tile_vec(p['b2'], W * m)
    s3o = jnp.zeros((C,), f32).at[1::2].set(p['s3'].reshape(-1))
    b3o = jnp.zeros((C,), f32).at[1::2].set(p['b3'].reshape(-1))
    s3t = tile_vec(s3o, W * C)
    b3t = tile_vec(b3o, W * C)

    # x1 passthrough permutation: input lane w*C + i -> output lane w*C + 2i.
    pperm = jnp.zeros((W * C, W * C), f32)
    rows = (jnp.arange(W)[:, None] * C + jnp.arange(m)[None, :]).reshape(-1)
    cols = (jnp.arange(W)[:, None] * C + 2 * jnp.arange(m)[None, :]).reshape(-1)
    pperm = pperm.at[rows, cols].set(1.0)

    return dict(w1bd=w1bd, s1t=s1t, b1t=b1t, kdw9=kdw9, s2t=s2t, b2t=b2t,
                w3sbd=w3sbd, s3t=s3t, b3t=b3t, pperm=pperm)


def make_params(key, inner):
    """Deterministic synthetic parameters (PyTorch conv shapes, folded BN)."""
    ks = jax.random.split(key, 6)

    def msra(k, shape, fan_out):
        return jax.random.normal(k, shape, jnp.float32) * jnp.sqrt(2.0 / fan_out)

    # PyTorch OIHW conv weights
    w1_oihw = msra(ks[0], (inner, inner, 1, 1), inner)        # 1x1 conv #1
    wdw_oihw = msra(ks[1], (inner, 1, 3, 3), 9)               # depthwise 3x3
    w3_oihw = msra(ks[2], (inner, inner, 1, 1), inner)        # 1x1 conv #2

    def bn_fold(k):
        kg, kb, km, kv = jax.random.split(k, 4)
        gamma = jax.random.uniform(kg, (inner,), jnp.float32, 0.5, 1.5)
        beta = jax.random.normal(kb, (inner,), jnp.float32) * 0.1
        mean = jax.random.normal(km, (inner,), jnp.float32) * 0.1
        var = jax.random.uniform(kv, (inner,), jnp.float32, 0.5, 1.5)
        scale = gamma / jnp.sqrt(var + 1e-5)
        bias = beta - mean * scale
        return scale.reshape(1, inner), bias.reshape(1, inner)

    s1, b1 = bn_fold(ks[3])
    s2, b2 = bn_fold(ks[4])
    s3, b3 = bn_fold(ks[5])
    return dict(w1_oihw=w1_oihw, wdw_oihw=wdw_oihw, w3_oihw=w3_oihw,
                s1=s1, b1=b1, s2=s2, b2=b2, s3=s3, b3=b3)


# --------------------------------------------------------------------------
# Public forward (NCHW in / NCHW out, like the PyTorch module)
# --------------------------------------------------------------------------
@jax.jit
def inverted_residual_stride1(x_nchw, prep):
    """Forward of InvertedResidual (stride==1). x_nchw: (N, C, H, W)."""
    N, C, H, W = x_nchw.shape
    inner = C // 2
    # NCHW -> lane-dense (N, H, W*C); XLA fuses transpose+reshape into 1 copy.
    xw = jnp.transpose(x_nchw, (0, 2, 3, 1)).reshape(N, H, W * C)
    out = _fused_invres(xw, prep, inner)          # already shuffled/concat'd
    return jnp.transpose(out.reshape(N, H, W, C), (0, 3, 1, 2))


# --------------------------------------------------------------------------
# Pure-JAX reference (matches the PyTorch module, eval-mode BN)
# --------------------------------------------------------------------------
def ref_forward(x, p, inner):
    dn = ('NCHW', 'OIHW', 'NCHW')
    x1 = x[:, :inner]
    x2 = x[:, inner:]

    def bn(y, s, b):
        return y * s.reshape(1, inner, 1, 1) + b.reshape(1, inner, 1, 1)

    y = lax.conv_general_dilated(x2, p['w1_oihw'], (1, 1), 'VALID',
                                 dimension_numbers=dn)
    y = jnp.maximum(bn(y, p['s1'], p['b1']), 0.0)
    y = lax.conv_general_dilated(y, p['wdw_oihw'], (1, 1), ((1, 1), (1, 1)),
                                 dimension_numbers=dn, feature_group_count=inner)
    y = bn(y, p['s2'], p['b2'])
    z = lax.conv_general_dilated(y, p['w3_oihw'], (1, 1), 'VALID',
                                 dimension_numbers=dn)
    z = jnp.maximum(bn(z, p['s3'], p['b3']), 0.0)

    out = jnp.concatenate([x1, z], axis=1)
    B, Cc, H, W = out.shape
    out = out.reshape(B, 2, Cc // 2, H, W).transpose(0, 2, 1, 3, 4)
    return out.reshape(B, Cc, H, W)


if __name__ == "__main__":
    key = jax.random.PRNGKey(0)
    kx, kp = jax.random.split(key)

    N, C, H, W = 2, 16, 16, 16          # in_channels == out_channels == 16
    inner = C // 2                      # = out_channels // 2
    x = jax.random.normal(kx, (N, C, H, W), jnp.float32)
    p = make_params(kp, inner)
    prep = prepare_params(p, W)         # one-time kernel-layout weight prep

    out = inverted_residual_stride1(x, prep)
    out = jax.block_until_ready(out)

    ref = jax.block_until_ready(ref_forward(x, p, inner))
    assert out.shape == (N, C, H, W)
    assert jnp.allclose(out, ref, atol=1e-4, rtol=1e-4), \
        f"max abs err {jnp.max(jnp.abs(out - ref))}"

    print("KERNEL_OK")
</pallas_src>

<mosaic_0001>
module attributes {stable_mosaic.version = 11 : i64} {
  func.func @_invres_kernel(%arg0: i32, %arg1: memref<2x16x256xf32, #tpu.memory_space<vmem>>, %arg2: memref<256x128xf32, #tpu.memory_space<vmem>>, %arg3: memref<1x128xf32, #tpu.memory_space<vmem>>, %arg4: memref<1x128xf32, #tpu.memory_space<vmem>>, %arg5: memref<9x128xf32, #tpu.memory_space<vmem>>, %arg6: memref<1x128xf32, #tpu.memory_space<vmem>>, %arg7: memref<1x128xf32, #tpu.memory_space<vmem>>, %arg8: memref<128x256xf32, #tpu.memory_space<vmem>>, %arg9: memref<1x256xf32, #tpu.memory_space<vmem>>, %arg10: memref<1x256xf32, #tpu.memory_space<vmem>>, %arg11: memref<256x256xf32, #tpu.memory_space<vmem>>, %arg12: memref<2x16x256xf32, #tpu.memory_space<vmem>>) attributes {dimension_semantics = [#tpu.dimension_semantics<parallel>], iteration_bounds = array<i64: 1>, scalar_prefetch = 0 : i64, scratch_operands = 0 : i64, tpu.core_type = #tpu.core_type<tc>, window_params = [{transform_indices = @transform_0, window_bounds = array<i64: 2, 16, 256>}, {pipeline_mode = #tpu.pipeline_mode<synchronous>, transform_indices = @transform_1, window_bounds = array<i64: 256, 128>}, {pipeline_mode = #tpu.pipeline_mode<synchronous>, transform_indices = @transform_2, window_bounds = array<i64: 1, 128>}, {pipeline_mode = #tpu.pipeline_mode<synchronous>, transform_indices = @transform_3, window_bounds = array<i64: 1, 128>}, {pipeline_mode = #tpu.pipeline_mode<synchronous>, transform_indices = @transform_4, window_bounds = array<i64: 9, 128>}, {pipeline_mode = #tpu.pipeline_mode<synchronous>, transform_indices = @transform_5, window_bounds = array<i64: 1, 128>}, {pipeline_mode = #tpu.pipeline_mode<synchronous>, transform_indices = @transform_6, window_bounds = array<i64: 1, 128>}, {pipeline_mode = #tpu.pipeline_mode<synchronous>, transform_indices = @transform_7, window_bounds = array<i64: 128, 256>}, {pipeline_mode = #tpu.pipeline_mode<synchronous>, transform_indices = @transform_8, window_bounds = array<i64: 1, 256>}, {pipeline_mode = #tpu.pipeline_mode<synchronous>, transform_indices = @transform_9, window_bounds = array<i64: 1, 256>}, {pipeline_mode = #tpu.pipeline_mode<synchronous>, transform_indices = @transform_10, window_bounds = array<i64: 256, 256>}, {transform_indices = @transform_11, window_bounds = array<i64: 2, 16, 256>}]} {
    %c0 = arith.constant 0 : index
    %c0_0 = arith.constant 0 : index
    %c0_1 = arith.constant 0 : index
    %0 = vector.load %arg1[%c0, %c0_0, %c0_1] : memref<2x16x256xf32, #tpu.memory_space<vmem>>, vector<2x16x256xf32>
    %1 = vector.shape_cast %0 : vector<2x16x256xf32> to vector<32x256xf32>
    %c0_2 = arith.constant 0 : index
    %c0_3 = arith.constant 0 : index
    %2 = vector.load %arg2[%c0_2, %c0_3] : memref<256x128xf32, #tpu.memory_space<vmem>>, vector<256x128xf32>
    %cst = arith.constant dense<0.000000e+00> : vector<32x128xf32>
    %3 = tpu.matmul %1, %2, %cst {dimension_numbers = #tpu.dot_dimension_numbers<[1], [0], [0], [1], [0, 0, 1, 1], [], []>} : vector<32x256xf32>, vector<256x128xf32>, vector<32x128xf32> -> vector<32x128xf32>
    %c0_4 = arith.constant 0 : index
    %c0_5 = arith.constant 0 : index
    %4 = vector.load %arg3[%c0_4, %c0_5] : memref<1x128xf32, #tpu.memory_space<vmem>>, vector<1x128xf32>
    %5 = vector.broadcast %4 : vector<1x128xf32> to vector<32x128xf32>
    %6 = arith.mulf %3, %5 : vector<32x128xf32>
    %c0_6 = arith.constant 0 : index
    %c0_7 = arith.constant 0 : index
    %7 = vector.load %arg4[%c0_6, %c0_7] : memref<1x128xf32, #tpu.memory_space<vmem>>, vector<1x128xf32>
    %8 = vector.broadcast %7 : vector<1x128xf32> to vector<32x128xf32>
    %9 = arith.addf %6, %8 : vector<32x128xf32>
    %cst_8 = arith.constant 0.000000e+00 : f32
    %10 = vector.broadcast %cst_8 : f32 to vector<32x128xf32>
    %11 = arith.maximumf %9, %10 : vector<32x128xf32>
    %c8_i32 = arith.constant 8 : i32
    %12 = tpu.dynamic_rotate %11 by %c8_i32 dim 1 : vector<32x128xf32>, i32 -> vector<32x128xf32>
    %c120_i32 = arith.constant 120 : i32
    %13 = tpu.dynamic_rotate %11 by %c120_i32 dim 1 : vector<32x128xf32>, i32 -> vector<32x128xf32>
    %c0_9 = arith.constant 0 : index
    %c0_10 = arith.constant 0 : index
    %14 = vector.load %arg5[%c0_9, %c0_10] : memref<9x128xf32, #tpu.memory_space<vmem>>, vector<9x128xf32>
    %15 = vector.extract_strided_slice %14 {offsets = [0, 0], sizes = [1, 128], strides = [1, 1]} : vector<9x128xf32> to vector<1x128xf32>
    %16 = vector.broadcast %15 : vector<1x128xf32> to vector<32x128xf32>
    %17 = arith.mulf %12, %16 : vector<32x128xf32>
    %18 = vector.extract_strided_slice %14 {offsets = [1, 0], sizes = [1, 128], strides = [1, 1]} : vector<9x128xf32> to vector<1x128xf32>
    %19 = vector.broadcast %18 : vector<1x128xf32> to vector<32x128xf32>
    %20 = arith.mulf %11, %19 : vector<32x128xf32>
    %21 = arith.addf %17, %20 : vector<32x128xf32>
    %22 = vector.extract_strided_slice %14 {offsets = [2, 0], sizes = [1, 128], strides = [1, 1]} : vector<9x128xf32> to vector<1x128xf32>
    %23 = vector.broadcast %22 : vector<1x128xf32> to vector<32x128xf32>
    %24 = arith.mulf %13, %23 : vector<32x128xf32>
    %25 = arith.addf %21, %24 : vector<32x128xf32>
    %26 = vector.extract_strided_slice %14 {offsets = [3, 0], sizes = [1, 128], strides = [1, 1]} : vector<9x128xf32> to vector<1x128xf32>
    %27 = vector.broadcast %26 : vector<1x128xf32> to vector<32x128xf32>
    %28 = arith.mulf %12, %27 : vector<32x128xf32>
    %29 = vector.extract_strided_slice %14 {offsets = [4, 0], sizes = [1, 128], strides = [1, 1]} : vector<9x128xf32> to vector<1x128xf32>
    %30 = vector.broadcast %29 : vector<1x128xf32> to vector<32x128xf32>
    %31 = arith.mulf %11, %30 : vector<32x128xf32>
    %32 = arith.addf %28, %31 : vector<32x128xf32>
    %33 = vector.extract_strided_slice %14 {offsets = [5, 0], sizes = [1, 128], strides = [1, 1]} : vector<9x128xf32> to vector<1x128xf32>
    %34 = vector.broadcast %33 : vector<1x128xf32> to vector<32x128xf32>
    %35 = arith.mulf %13, %34 : vector<32x128xf32>
    %36 = arith.addf %32, %35 : vector<32x128xf32>
    %37 = vector.extract_strided_slice %14 {offsets = [6, 0], sizes = [1, 128], strides = [1, 1]} : vector<9x128xf32> to vector<1x128xf32>
    %38 = vector.broadcast %37 : vector<1x128xf32> to vector<32x128xf32>
    %39 = arith.mulf %12, %38 : vector<32x128xf32>
    %40 = vector.extract_strided_slice %14 {offsets = [7, 0], sizes = [1, 128], strides = [1, 1]} : vector<9x128xf32> to vector<1x128xf32>
    %41 = vector.broadcast %40 : vector<1x128xf32> to vector<32x128xf32>
    %42 = arith.mulf %11, %41 : vector<32x128xf32>
    %43 = arith.addf %39, %42 : vector<32x128xf32>
    %44 = vector.extract_strided_slice %14 {offsets = [8, 0], sizes = [1, 128], strides = [1, 1]} : vector<9x128xf32> to vector<1x128xf32>
    %45 = vector.broadcast %44 : vector<1x128xf32> to vector<32x128xf32>
    %46 = arith.mulf %13, %45 : vector<32x128xf32>
    %47 = arith.addf %43, %46 : vector<32x128xf32>
    %48 = tpu.iota {dimensions = array<i32: 0>} : vector<32x128xi32>
    %c16_i32 = arith.constant 16 : i32
    %c0_i32 = arith.constant 0 : i32
    %49 = arith.cmpi eq, %c16_i32, %c0_i32 : i32
    %c1_i32 = arith.constant 1 : i32
    %50 = arith.select %49, %c1_i32, %c16_i32 : i32
    %51 = vector.broadcast %50 : i32 to vector<32x128xi32>
    %52 = arith.remsi %48, %51 : vector<32x128xi32>
    %c0_i32_11 = arith.constant 0 : i32
    %53 = vector.broadcast %c0_i32_11 : i32 to vector<32x128xi32>
    %54 = arith.cmpi ne, %52, %53 : vector<32x128xi32>
    %c0_i32_12 = arith.constant 0 : i32
    %55 = vector.broadcast %c0_i32_12 : i32 to vector<32x128xi32>
    %56 = arith.cmpi slt, %52, %55 : vector<32x128xi32>
    %c0_i32_13 = arith.constant 0 : i32
    %57 = arith.cmpi slt, %50, %c0_i32_13 : i32
    %58 = vector.broadcast %57 : i1 to vector<32x128xi1>
    %59 = vector.broadcast %58 : vector<32x128xi1> to vector<32x128xi1>
    %60 = arith.xori %56, %59 : vector<32x128xi1>
    %61 = arith.andi %60, %54 : vector<32x128xi1>
    %62 = vector.broadcast %50 : i32 to vector<32x128xi32>
    %63 = arith.addi %52, %62 : vector<32x128xi32>
    %64 = arith.select %61, %63, %52 : vector<32x128xi1>, vector<32x128xi32>
    %c1_i32_14 = arith.constant 1 : i32
    %65 = vector.broadcast %c1_i32_14 : i32 to vector<32x128xi32>
    %66 = arith.cmpi sge, %64, %65 : vector<32x128xi32>
    %67 = arith.extui %66 : vector<32x128xi1> to vector<32x128xi32>
    %68 = arith.sitofp %67 : vector<32x128xi32> to vector<32x128xf32>
    %c15_i32 = arith.constant 15 : i32
    %69 = vector.broadcast %c15_i32 : i32 to vector<32x128xi32>
    %70 = arith.cmpi slt, %64, %69 : vector<32x128xi32>
    %71 = arith.extui %70 : vector<32x128xi1> to vector<32x128xi32>
    %72 = arith.sitofp %71 : vector<32x128xi32> to vector<32x128xf32>
    %c1_i32_15 = arith.constant 1 : i32
    %73 = tpu.dynamic_rotate %25 by %c1_i32_15 dim 0 : vector<32x128xf32>, i32 -> vector<32x128xf32>
    %74 = arith.mulf %73, %68 : vector<32x128xf32>
    %75 = arith.addf %36, %74 : vector<32x128xf32>
    %c31_i32 = arith.constant 31 : i32
    %76 = tpu.dynamic_rotate %47 by %c31_i32 dim 0 : vector<32x128xf32>, i32 -> vector<32x128xf32>
    %77 = arith.mulf %76, %72 : vector<32x128xf32>
    %78 = arith.addf %75, %77 : vector<32x128xf32>
    %c0_16 = arith.constant 0 : index
    %c0_17 = arith.constant 0 : index
    %79 = vector.load %arg6[%c0_16, %c0_17] : memref<1x128xf32, #tpu.memory_space<vmem>>, vector<1x128xf32>
    %80 = vector.broadcast %79 : vector<1x128xf32> to vector<32x128xf32>
    %81 = arith.mulf %78, %80 : vector<32x128xf32>
    %c0_18 = arith.constant 0 : index
    %c0_19 = arith.constant 0 : index
    %82 = vector.load %arg7[%c0_18, %c0_19] : memref<1x128xf32, #tpu.memory_space<vmem>>, vector<1x128xf32>
    %83 = vector.broadcast %82 : vector<1x128xf32> to vector<32x128xf32>
    %84 = arith.addf %81, %83 : vector<32x128xf32>
    %c0_20 = arith.constant 0 : index
    %c0_21 = arith.constant 0 : index
    %85 = vector.load %arg8[%c0_20, %c0_21] : memref<128x256xf32, #tpu.memory_space<vmem>>, vector<128x256xf32>
    %cst_22 = arith.constant dense<0.000000e+00> : vector<32x256xf32>
    %86 = tpu.matmul %84, %85, %cst_22 {dimension_numbers = #tpu.dot_dimension_numbers<[1], [0], [0], [1], [0, 0, 1, 1], [], []>} : vector<32x128xf32>, vector<128x256xf32>, vector<32x256xf32> -> vector<32x256xf32>
    %c0_23 = arith.constant 0 : index
    %c0_24 = arith.constant 0 : index
    %87 = vector.load %arg9[%c0_23, %c0_24] : memref<1x256xf32, #tpu.memory_space<vmem>>, vector<1x256xf32>
    %88 = vector.broadcast %87 : vector<1x256xf32> to vector<32x256xf32>
    %89 = arith.mulf %86, %88 : vector<32x256xf32>
    %c0_25 = arith.constant 0 : index
    %c0_26 = arith.constant 0 : index
    %90 = vector.load %arg10[%c0_25, %c0_26] : memref<1x256xf32, #tpu.memory_space<vmem>>, vector<1x256xf32>
    %91 = vector.broadcast %90 : vector<1x256xf32> to vector<32x256xf32>
    %92 = arith.addf %89, %91 : vector<32x256xf32>
    %cst_27 = arith.constant 0.000000e+00 : f32
    %93 = vector.broadcast %cst_27 : f32 to vector<32x256xf32>
    %94 = arith.maximumf %92, %93 : vector<32x256xf32>
    %c0_28 = arith.constant 0 : index
    %c0_29 = arith.constant 0 : index
    %95 = vector.load %arg11[%c0_28, %c0_29] : memref<256x256xf32, #tpu.memory_space<vmem>>, vector<256x256xf32>
    %cst_30 = arith.constant dense<0.000000e+00> : vector<32x256xf32>
    %96 = tpu.matmul %1, %95, %cst_30 {dimension_numbers = #tpu.dot_dimension_numbers<[1], [0], [0], [1], [0, 0, 1, 1], [], []>} : vector<32x256xf32>, vector<256x256xf32>, vector<32x256xf32> -> vector<32x256xf32>
    %97 = arith.addf %94, %96 : vector<32x256xf32>
    %98 = vector.shape_cast %97 : vector<32x256xf32> to vector<2x16x256xf32>
    %c0_31 = arith.constant 0 : index
    %c0_32 = arith.constant 0 : index
    %c0_33 = arith.constant 0 : index
    %99 = vector.load %arg12[%c0_31, %c0_32, %c0_33] : memref<2x16x256xf32, #tpu.memory_space<vmem>>, vector<2x16x256xf32>
    tpu.vector_store %arg12[%c0_31, %c0_32, %c0_33], %98 {strides = array<i32>} : memref<2x16x256xf32, #tpu.memory_space<vmem>>, vector<2x16x256xf32>,
    return
  }
  func.func @transform_0(%arg0: i32) -> (i32, i32, i32) {
    %c0_i32 = arith.constant 0 : i32
    %c0_i32_0 = arith.constant 0 : i32
    %c0_i32_1 = arith.constant 0 : i32
    return %arg0, %c0_i32, %c0_i32_0 : i32, i32, i32
  }
  func.func @transform_1(%arg0: i32) -> (i32, i32) {
    %c0_i32 = arith.constant 0 : i32
    %c0_i32_0 = arith.constant 0 : i32
    %c0_i32_1 = arith.constant 0 : i32
    return %c0_i32, %c0_i32_0 : i32, i32
  }
  func.func @transform_2(%arg0: i32) -> (i32, i32) {
    %c0_i32 = arith.constant 0 : i32
    %c0_i32_0 = arith.constant 0 : i32
    %c0_i32_1 = arith.constant 0 : i32
    return %c0_i32, %c0_i32_0 : i32, i32
  }
  func.func @transform_3(%arg0: i32) -> (i32, i32) {
    %c0_i32 = arith.constant 0 : i32
    %c0_i32_0 = arith.constant 0 : i32
    %c0_i32_1 = arith.constant 0 : i32
    return %c0_i32, %c0_i32_0 : i32, i32
  }
  func.func @transform_4(%arg0: i32) -> (i32, i32) {
    %c0_i32 = arith.constant 0 : i32
    %c0_i32_0 = arith.constant 0 : i32
    %c0_i32_1 = arith.constant 0 : i32
    return %c0_i32, %c0_i32_0 : i32, i32
  }
  func.func @transform_5(%arg0: i32) -> (i32, i32) {
    %c0_i32 = arith.constant 0 : i32
    %c0_i32_0 = arith.constant 0 : i32
    %c0_i32_1 = arith.constant 0 : i32
    return %c0_i32, %c0_i32_0 : i32, i32
  }
  func.func @transform_6(%arg0: i32) -> (i32, i32) {
    %c0_i32 = arith.constant 0 : i32
    %c0_i32_0 = arith.constant 0 : i32
    %c0_i32_1 = arith.constant 0 : i32
    return %c0_i32, %c0_i32_0 : i32, i32
  }
  func.func @transform_7(%arg0: i32) -> (i32, i32) {
    %c0_i32 = arith.constant 0 : i32
    %c0_i32_0 = arith.constant 0 : i32
    %c0_i32_1 = arith.constant 0 : i32
    return %c0_i32, %c0_i32_0 : i32, i32
  }
  func.func @transform_8(%arg0: i32) -> (i32, i32) {
    %c0_i32 = arith.constant 0 : i32
    %c0_i32_0 = arith.constant 0 : i32
    %c0_i32_1 = arith.constant 0 : i32
    return %c0_i32, %c0_i32_0 : i32, i32
  }
  func.func @transform_9(%arg0: i32) -> (i32, i32) {
    %c0_i32 = arith.constant 0 : i32
    %c0_i32_0 = arith.constant 0 : i32
    %c0_i32_1 = arith.constant 0 : i32
    return %c0_i32, %c0_i32_0 : i32, i32
  }
  func.func @transform_10(%arg0: i32) -> (i32, i32) {
    %c0_i32 = arith.constant 0 : i32
    %c0_i32_0 = arith.constant 0 : i32
    %c0_i32_1 = arith.constant 0 : i32
    return %c0_i32, %c0_i32_0 : i32, i32
  }
  func.func @transform_11(%arg0: i32) -> (i32, i32, i32) {
    %c0_i32 = arith.constant 0 : i32
    %c0_i32_0 = arith.constant 0 : i32
    %c0_i32_1 = arith.constant 0 : i32
    return %arg0, %c0_i32, %c0_i32_0 : i32, i32, i32
  }
}

</mosaic_0001>

<llo_original>
// kernel: inverted_residual_stride1.1
$region0: #{inverted_residual_stride1.1}
  #allocation0 [shape = 'u32[]', space=smem, size = 0x4, offset = 0x4, fixed_abs, tag = 'smem constant byte address 0x4 - core index']
  #allocation1 [shape = 'u32[144,128]{1,0:T(1,128)}', space=vmem, size = 0x12000, scoped, tag = 'internal scratch']
  %s0 = inlined_call_operand.vmem [shape: f32[2,16,256], index: 0, kind: input, shape index: {}]
  %s1 = inlined_call_operand.vmem [shape: f32[256,128], index: 1, kind: input, shape index: {}]
  %s2 = inlined_call_operand.vmem [shape: f32[1,128], index: 2, kind: input, shape index: {}]
  %s3 = inlined_call_operand.vmem [shape: f32[1,128], index: 3, kind: input, shape index: {}]
  %s4 = inlined_call_operand.vmem [shape: f32[9,128], index: 4, kind: input, shape index: {}]
  %s5 = inlined_call_operand.vmem [shape: f32[1,128], index: 5, kind: input, shape index: {}]
  %s6 = inlined_call_operand.vmem [shape: f32[1,128], index: 6, kind: input, shape index: {}]
  %s7 = inlined_call_operand.vmem [shape: f32[128,256], index: 7, kind: input, shape index: {}]
  %s8 = inlined_call_operand.vmem [shape: f32[1,256], index: 8, kind: input, shape index: {}]
  %s9 = inlined_call_operand.vmem [shape: f32[1,256], index: 9, kind: input, shape index: {}]
  %s10 = inlined_call_operand.vmem [shape: f32[256,256], index: 10, kind: input, shape index: {}]
  %s11 = inlined_call_operand.vmem [shape: f32[2,16,256], index: 11, kind: output, shape index: {}]
  %s12 = sld [smem:[#allocation0]]
  $region54: #{inverted_residual_stride1.1} parent=0
    _
  %s14 = ssub.s32 1, %s12
  %s15 = scalar_select 0, %s14, %s12
  // Predicated region
  $region2: #{inverted_residual_stride1.1} parent=0 // pred_check
    _
  $region3: #{inverted_residual_stride1.1} parent=0 // pred_check_branch
    %17 = sbr.rel (0) target = $region5
  $region4: #{inverted_residual_stride1.1} parent=0 // pred_region
    _
  $region5: #{inverted_residual_stride1.1} parent=0 // pred_fallthru
    _
  // Predicated region
  $region6: #{inverted_residual_stride1.1} parent=0 // pred_check
    _
  $region7: #{inverted_residual_stride1.1} parent=0 // pred_check_branch
    %19 = sbr.rel (0) target = $region9
  $region8: #{inverted_residual_stride1.1} parent=0 // pred_region
    _
  $region9: #{inverted_residual_stride1.1} parent=0 // pred_fallthru
    _
  // Predicated region
  $region10: #{inverted_residual_stride1.1} parent=0 // pred_check
    _
  $region11: #{inverted_residual_stride1.1} parent=0 // pred_check_branch
    %21 = sbr.rel (0) target = $region13
  $region12: #{inverted_residual_stride1.1} parent=0 // pred_region
    _
  $region13: #{inverted_residual_stride1.1} parent=0 // pred_fallthru
    _
  // Predicated region
  $region14: #{inverted_residual_stride1.1} parent=0 // pred_check
    _
  $region15: #{inverted_residual_stride1.1} parent=0 // pred_check_branch
    %23 = sbr.rel (0) target = $region17
  $region16: #{inverted_residual_stride1.1} parent=0 // pred_region
    _
  $region17: #{inverted_residual_stride1.1} parent=0 // pred_fallthru
    _
  // Predicated region
  $region18: #{inverted_residual_stride1.1} parent=0 // pred_check
    _
  $region19: #{inverted_residual_stride1.1} parent=0 // pred_check_branch
    %25 = sbr.rel (0) target = $region21
  $region20: #{inverted_residual_stride1.1} parent=0 // pred_region
    _
  $region21: #{inverted_residual_stride1.1} parent=0 // pred_fallthru
    _
  // Predicated region
  $region22: #{inverted_residual_stride1.1} parent=0 // pred_check
    _
  $region23: #{inverted_residual_stride1.1} parent=0 // pred_check_branch
    %27 = sbr.rel (0) target = $region25
  $region24: #{inverted_residual_stride1.1} parent=0 // pred_region
    _
  $region25: #{inverted_residual_stride1.1} parent=0 // pred_fallthru
    _
  // Predicated region
  $region26: #{inverted_residual_stride1.1} parent=0 // pred_check
    _
  $region27: #{inverted_residual_stride1.1} parent=0 // pred_check_branch
    %29 = sbr.rel (0) target = $region29
  $region28: #{inverted_residual_stride1.1} parent=0 // pred_region
    _
  $region29: #{inverted_residual_stride1.1} parent=0 // pred_fallthru
    _
  // Predicated region
  $region30: #{inverted_residual_stride1.1} parent=0 // pred_check
    _
  $region31: #{inverted_residual_stride1.1} parent=0 // pred_check_branch
    %31 = sbr.rel (0) target = $region33
  $region32: #{inverted_residual_stride1.1} parent=0 // pred_region
    _
  $region33: #{inverted_residual_stride1.1} parent=0 // pred_fallthru
    _
  // Predicated region
  $region34: #{inverted_residual_stride1.1} parent=0 // pred_check
    _
  $region35: #{inverted_residual_stride1.1} parent=0 // pred_check_branch
    %33 = sbr.rel (0) target = $region37
  $region36: #{inverted_residual_stride1.1} parent=0 // pred_region
    _
  $region37: #{inverted_residual_stride1.1} parent=0 // pred_fallthru
    _
  // Predicated region
  $region38: #{inverted_residual_stride1.1} parent=0 // pred_check
    _
  $region39: #{inverted_residual_stride1.1} parent=0 // pred_check_branch
    %35 = sbr.rel (0) target = $region41
  $region40: #{inverted_residual_stride1.1} parent=0 // pred_region
    _
  $region41: #{inverted_residual_stride1.1} parent=0 // pred_fallthru
    _
  // Predicated region
  $region42: #{inverted_residual_stride1.1} parent=0 // pred_check
    _
  $region43: #{inverted_residual_stride1.1} parent=0 // pred_check_branch
    %37 = sbr.rel (0) target = $region45
  $region44: #{inverted_residual_stride1.1} parent=0 // pred_region
    _
  $region45: #{inverted_residual_stride1.1} parent=0 // pred_fallthru
    _
  %v38 = vld [vmem:[%s0] sm:$0xff]
  %v39 = vld [vmem:[%s0 + $0x8] sm:$0xff]
  %v40 = vld [vmem:[%s0 + $0x10] sm:$0xff]
  %v41 = vld [vmem:[%s0 + $0x18] sm:$0xff]
  %v42 = vld [vmem:[%s0 + $0x20] sm:$0xff]
  %v43 = vld [vmem:[%s0 + $0x28] sm:$0xff]
  %v44 = vld [vmem:[%s0 + $0x30] sm:$0xff]
  %v45 = vld [vmem:[%s0 + $0x38] sm:$0xff]
  %v46 = vld [vmem:[%s1] sm:$0xff]
  %v47 = vld [vmem:[%s1 + $0x8] sm:$0xff]
  %v48 = vld [vmem:[%s1 + $0x10] sm:$0xff]
  %v49 = vld [vmem:[%s1 + $0x18] sm:$0xff]
  %v50 = vld [vmem:[%s1 + $0x20] sm:$0xff]
  %v51 = vld [vmem:[%s1 + $0x28] sm:$0xff]
  %v52 = vld [vmem:[%s1 + $0x30] sm:$0xff]
  %v53 = vld [vmem:[%s1 + $0x38] sm:$0xff]
  %v54 = vld [vmem:[%s1 + $0x40] sm:$0xff]
  %v55 = vld [vmem:[%s1 + $0x48] sm:$0xff]
  %v56 = vld [vmem:[%s1 + $0x50] sm:$0xff]
  %v57 = vld [vmem:[%s1 + $0x58] sm:$0xff]
  %v58 = vld [vmem:[%s1 + $0x60] sm:$0xff]
  %v59 = vld [vmem:[%s1 + $0x68] sm:$0xff]
  %v60 = vld [vmem:[%s1 + $0x70] sm:$0xff]
  %v61 = vld [vmem:[%s1 + $0x78] sm:$0xff]
  %v62 = vld [vmem:[%s1 + $0x80] sm:$0xff]
  %v63 = vld [vmem:[%s1 + $0x88] sm:$0xff]
  %v64 = vld [vmem:[%s1 + $0x90] sm:$0xff]
  %v65 = vld [vmem:[%s1 + $0x98] sm:$0xff]
  %v66 = vld [vmem:[%s1 + $0xa0] sm:$0xff]
  %v67 = vld [vmem:[%s1 + $0xa8] sm:$0xff]
  %v68 = vld [vmem:[%s1 + $0xb0] sm:$0xff]
  %v69 = vld [vmem:[%s1 + $0xb8] sm:$0xff]
  %v70 = vld [vmem:[%s1 + $0xc0] sm:$0xff]
  %v71 = vld [vmem:[%s1 + $0xc8] sm:$0xff]
  %v72 = vld [vmem:[%s1 + $0xd0] sm:$0xff]
  %v73 = vld [vmem:[%s1 + $0xd8] sm:$0xff]
  %v74 = vld [vmem:[%s1 + $0xe0] sm:$0xff]
  %v75 = vld [vmem:[%s1 + $0xe8] sm:$0xff]
  %v76 = vld [vmem:[%s1 + $0xf0] sm:$0xff]
  %v77 = vld [vmem:[%s1 + $0xf8] sm:$0xff]
  %78 = vmatprep.subr.mxu0 0.0
  %79 = vmatpush1.msra.mxu0 %v46
  %80 = vmatprep.subr.mxu0 0.0
  %81 = vmatpush1.msra.mxu0 %v47
  %82 = vmatprep.subr.mxu0 0.0
  %83 = vmatpush1.msra.mxu0 %v48
  %84 = vmatprep.subr.mxu0 0.0
  %85 = vmatpush1.msra.mxu0 %v49
  %86 = vmatprep.subr.mxu0 0.0
  %87 = vmatpush1.msra.mxu0 %v50
  %88 = vmatprep.subr.mxu0 0.0
  %89 = vmatpush1.msra.mxu0 %v51
  %90 = vmatprep.subr.mxu0 0.0
  %91 = vmatpush1.msra.mxu0 %v52
  %92 = vmatprep.subr.mxu0 0.0
  %93 = vmatpush1.msra.mxu0 %v53
  %94 = vmatprep.subr.mxu0 0.0
  %95 = vmatpush1.msra.mxu0 %v54
  %96 = vmatprep.subr.mxu0 0.0
  %97 = vmatpush1.msra.mxu0 %v55
  %98 = vmatprep.subr.mxu0 0.0
  %99 = vmatpush1.msra.mxu0 %v56
  %100 = vmatprep.subr.mxu0 0.0
  %101 = vmatpush1.msra.mxu0 %v57
  %102 = vmatprep.subr.mxu0 0.0
  %103 = vmatpush1.msra.mxu0 %v58
  %104 = vmatprep.subr.mxu0 0.0
  %105 = vmatpush1.msra.mxu0 %v59
  %106 = vmatprep.subr.mxu0 0.0
  %107 = vmatpush1.msra.mxu0 %v60
  %108 = vmatprep.subr.mxu0 0.0
  %109 = vmatpush1.msra.mxu0 %v61
  %110 = vmatprep.subr.mxu0 0.0
  %111 = vmatpush1.msra.mxu0 %v62
  %112 = vmatprep.subr.mxu0 0.0
  %113 = vmatpush1.msra.mxu0 %v63
  %114 = vmatprep.subr.mxu0 0.0
  %115 = vmatpush1.msra.mxu0 %v64
  %116 = vmatprep.subr.mxu0 0.0
  %117 = vmatpush1.msra.mxu0 %v65
  %118 = vmatprep.subr.mxu0 0.0
  %119 = vmatpush1.msra.mxu0 %v66
  %120 = vmatprep.subr.mxu0 0.0
  %121 = vmatpush1.msra.mxu0 %v67
  %122 = vmatprep.subr.mxu0 0.0
  %123 = vmatpush1.msra.mxu0 %v68
  %124 = vmatprep.subr.mxu0 0.0
  %125 = vmatpush1.msra.mxu0 %v69
  %126 = vmatprep.subr.mxu0 0.0
  %127 = vmatpush1.msra.mxu0 %v70
  %128 = vmatprep.subr.mxu0 0.0
  %129 = vmatpush1.msra.mxu0 %v71
  %130 = vmatprep.subr.mxu0 0.0
  %131 = vmatpush1.msra.mxu0 %v72
  %132 = vmatprep.subr.mxu0 0.0
  %133 = vmatpush1.msra.mxu0 %v73
  %134 = vmatprep.subr.mxu0 0.0
  %135 = vmatpush1.msra.mxu0 %v74
  %136 = vmatprep.subr.mxu0 0.0
  %137 = vmatpush1.msra.mxu0 %v75
  %138 = vmatprep.subr.mxu0 0.0
  %139 = vmatpush1.msra.mxu0 %v76
  %140 = vmatprep.subr.mxu0 0.0
  %141 = vmatpush1.msra.mxu0 %v77
  %142 = vmatprep.mubr.f32.mxu0 %v39
  %143 = vmatmul.mubr.f32.gmra.mrb[0].mxu0 %v38
  %v144 = vpop.f32.mrb[0].mxu0
  %v145 = vadd.f32 0.0, %v144
  %v146 = vpop.f32.mrb[0].mxu0
  %147 = vmatprep.mubr.f32.mxu0 %v41
  %148 = vmatmul.mubr.f32.gmra.mrb[0].mxu0 %v40
  %v149 = vpop.f32.mrb[0].mxu0
  %v150 = vadd.f32 0.0, %v149
  %v151 = vpop.f32.mrb[0].mxu0
  %152 = vmatprep.mubr.f32.mxu0 %v43
  %153 = vmatmul.mubr.f32.gmra.mrb[0].mxu0 %v42
  %v154 = vpop.f32.mrb[0].mxu0
  %v155 = vadd.f32 0.0, %v154
  %v156 = vpop.f32.mrb[0].mxu0
  %157 = vmatprep.mubr.f32.mxu0 %v45
  %158 = vmatmul.mubr.f32.gmra.mrb[0].mxu0 %v44
  %v159 = vpop.f32.mrb[0].mxu0
  %v160 = vadd.f32 0.0, %v159
  %v161 = vpop.f32.mrb[0].mxu0
  %162 = vdwg.mxu0
  %v163 = vld [vmem:[%s2] sm:$0x1]
  %v165 = vlaneseq
  %v166 = vshrl.u32 %v165, 7
  %v167 = vsub.s32 0, %v166
  %v168 = vrot.slane %v163, %v167
  %v170 = vmul.f32 %v145, %v168
  %v171 = vmul.f32 %v150, %v168
  %v172 = vmul.f32 %v155, %v168
  %v173 = vmul.f32 %v160, %v168
  %v174 = vld [vmem:[%s3] sm:$0x1]
  %v176 = vlaneseq
  %v177 = vshrl.u32 %v176, 7
  %v178 = vsub.s32 0, %v177
  %v179 = vrot.slane %v174, %v178
  %v181 = vadd.f32 %v170, %v179
  %v182 = vadd.f32 %v171, %v179
  %v183 = vadd.f32 %v172, %v179
  %v184 = vadd.f32 %v173, %v179
  %v185 = vmax.f32 %v181, 0.0
  %v186 = vmax.f32 %v182, 0.0
  %v187 = vmax.f32 %v183, 0.0
  %v188 = vmax.f32 %v184, 0.0
  %189 = vrot.lane.b32.xlu0 %v185, 8
  %v190 = vpop.permute.xlu0 %189
  %191 = vrot.lane.b32.xlu0 %v186, 8
  %v192 = vpop.permute.xlu0 %191
  %193 = vrot.lane.b32.xlu0 %v187, 8
  %v194 = vpop.permute.xlu0 %193
  %195 = vrot.lane.b32.xlu0 %v188, 8
  %v196 = vpop.permute.xlu0 %195
  %197 = vrot.lane.b32.xlu0 %v185, 120
  %v198 = vpop.permute.xlu0 %197
  %199 = vrot.lane.b32.xlu0 %v186, 120
  %v200 = vpop.permute.xlu0 %199
  %201 = vrot.lane.b32.xlu0 %v187, 120
  %v202 = vpop.permute.xlu0 %201
  %203 = vrot.lane.b32.xlu0 %v188, 120
  %v204 = vpop.permute.xlu0 %203
  %v205 = vld [vmem:[%s4] sm:$0xff]
  %v206 = vld [vmem:[%s4 + $0x8] sm:$0x1]
  %v207 = vlaneseq
  %v208 = vshrl.u32 %v207, 7
  %v209 = vsub.s32 0, %v208
  %v210 = vrot.slane %v205, %v209
  %v211 = vmul.f32 %v190, %v210
  %v212 = vmul.f32 %v192, %v210
  %v213 = vmul.f32 %v194, %v210
  %v214 = vmul.f32 %v196, %v210
  %v215 = vlaneseq
  %v216 = vshrl.u32 %v215, 7
  %v217 = vsub.s32 1, %v216
  %v218 = vrot.slane %v205, %v217
  %v219 = vmul.f32 %v185, %v218
  %v220 = vmul.f32 %v186, %v218
  %v221 = vmul.f32 %v187, %v218
  %v222 = vmul.f32 %v188, %v218
  %v223 = vadd.f32 %v211, %v219
  %v224 = vadd.f32 %v212, %v220
  %v225 = vadd.f32 %v213, %v221
  %v226 = vadd.f32 %v214, %v222
  %v227 = vlaneseq
  %v228 = vshrl.u32 %v227, 7
  %v229 = vsub.s32 2, %v228
  %v230 = vrot.slane %v205, %v229
  %v231 = vmul.f32 %v198, %v230
  %v232 = vmul.f32 %v200, %v230
  %v233 = vmul.f32 %v202, %v230
  %v234 = vmul.f32 %v204, %v230
  %v235 = vadd.f32 %v223, %v231
  %v236 = vadd.f32 %v224, %v232
  %v237 = vadd.f32 %v225, %v233
  %v238 = vadd.f32 %v226, %v234
  %v239 = vlaneseq
  %v240 = vshrl.u32 %v239, 7
  %v241 = vsub.s32 3, %v240
  %v242 = vrot.slane %v205, %v241
  %v243 = vmul.f32 %v190, %v242
  %v244 = vmul.f32 %v192, %v242
  %v245 = vmul.f32 %v194, %v242
  %v246 = vmul.f32 %v196, %v242
  %v247 = vlaneseq
  %v248 = vshrl.u32 %v247, 7
  %v249 = vsub.s32 4, %v248
  %v250 = vrot.slane %v205, %v249
  %v251 = vmul.f32 %v185, %v250
  %v252 = vmul.f32 %v186, %v250
  %v253 = vmul.f32 %v187, %v250
  %v254 = vmul.f32 %v188, %v250
  %v255 = vadd.f32 %v243, %v251
  %v256 = vadd.f32 %v244, %v252
  %v257 = vadd.f32 %v245, %v253
  %v258 = vadd.f32 %v246, %v254
  %v259 = vlaneseq
  %v260 = vshrl.u32 %v259, 7
  %v261 = vsub.s32 5, %v260
  %v262 = vrot.slane %v205, %v261
  %v263 = vmul.f32 %v198, %v262
  %v264 = vmul.f32 %v200, %v262
  %v265 = vmul.f32 %v202, %v262
  %v266 = vmul.f32 %v204, %v262
  %v267 = vadd.f32 %v255, %v263
  %v268 = vadd.f32 %v256, %v264
  %v269 = vadd.f32 %v257, %v265
  %v270 = vadd.f32 %v258, %v266
  %v271 = vlaneseq
  %v272 = vshrl.u32 %v271, 7
  %v273 = vsub.s32 6, %v272
  %v274 = vrot.slane %v205, %v273
  %v275 = vmul.f32 %v190, %v274
  %v276 = vmul.f32 %v192, %v274
  %v277 = vmul.f32 %v194, %v274
  %v278 = vmul.f32 %v196, %v274
  %v279 = vlaneseq
  %v280 = vshrl.u32 %v279, 7
  %v281 = vsub.s32 7, %v280
  %v282 = vrot.slane %v205, %v281
  %v283 = vmul.f32 %v185, %v282
  %v284 = vmul.f32 %v186, %v282
  %v285 = vmul.f32 %v187, %v282
  %v286 = vmul.f32 %v188, %v282
  %v287 = vadd.f32 %v275, %v283
  %v288 = vadd.f32 %v276, %v284
  %v289 = vadd.f32 %v277, %v285
  %v290 = vadd.f32 %v278, %v286
  %v291 = vlaneseq
  %v292 = vshrl.u32 %v291, 7
  %v293 = vsub.s32 0, %v292
  %v294 = vrot.slane %v206, %v293
  %v295 = vmul.f32 %v198, %v294
  %v296 = vmul.f32 %v200, %v294
  %v297 = vmul.f32 %v202, %v294
  %v298 = vmul.f32 %v204, %v294
  %v299 = vadd.f32 %v287, %v295
  %v300 = vadd.f32 %v288, %v296
  %v301 = vadd.f32 %v289, %v297
  %v302 = vadd.f32 %v290, %v298
  %v303 = vlaneseq
  %v304 = vshrl.u32 %v303, 7
  %v305 = vadd.s32 %v304, 8
  %v306 = vadd.s32 %v304, 16
  %v307 = vadd.s32 %v304, 24
  %vm308 = vcmp.lt.s32.totalorder %v304, 0
  %v309 = vsub.s32 0, %v304
  %v310 = vsel %vm308, %v309, %v304
  %v311 = vshrl.u32 %v310, 4
  %v312 = vand.u32 %v310, 15
  %v313 = vsub.s32 0, %v312
  %v314 = vsel %vm308, %v313, %v312
  %vm315 = vcmp.lt.s32.totalorder %v305, 0
  %v316 = vsub.s32 0, %v305
  %v317 = vsel %vm315, %v316, %v305
  %v318 = vshrl.u32 %v317, 4
  %v319 = vand.u32 %v317, 15
  %v320 = vsub.s32 0, %v319
  %v321 = vsel %vm315, %v320, %v319
  %vm322 = vcmp.lt.s32.totalorder %v306, 0
  %v323 = vsub.s32 0, %v306
  %v324 = vsel %vm322, %v323, %v306
  %v325 = vshrl.u32 %v324, 4
  %v326 = vand.u32 %v324, 15
  %v327 = vsub.s32 0, %v326
  %v328 = vsel %vm322, %v327, %v326
  %vm329 = vcmp.lt.s32.totalorder %v307, 0
  %v330 = vsub.s32 0, %v307
  %v331 = vsel %vm329, %v330, %v307
  %v332 = vshrl.u32 %v331, 4
  %v333 = vand.u32 %v331, 15
  %v334 = vsub.s32 0, %v333
  %v335 = vsel %vm329, %v334, %v333
  %vm336 = vcmp.ne.s32.totalorder %v314, 0
  %vm337 = vcmp.ne.s32.totalorder %v321, 0
  %vm338 = vcmp.ne.s32.totalorder %v328, 0
  %vm339 = vcmp.ne.s32.totalorder %v335, 0
  %vm340 = vcmp.lt.s32.totalorder %v314, 0
  %vm341 = vcmp.lt.s32.totalorder %v321, 0
  %vm342 = vcmp.lt.s32.totalorder %v328, 0
  %vm343 = vcmp.lt.s32.totalorder %v335, 0
  %vm344 = vmand %vm340, %vm336
  %vm345 = vmand %vm341, %vm337
  %vm346 = vmand %vm342, %vm338
  %vm347 = vmand %vm343, %vm339
  %v348 = vadd.s32 %v314, 16
  %v349 = vadd.s32 %v321, 16
  %v350 = vadd.s32 %v328, 16
  %v351 = vadd.s32 %v335, 16
  %v352 = vsel %vm344, %v348, %v314
  %v353 = vsel %vm345, %v349, %v321
  %v354 = vsel %vm346, %v350, %v328
  %v355 = vsel %vm347, %v351, %v335
  %vm356 = vcmp.ge.s32.totalorder %v352, 1
  %vm357 = vcmp.ge.s32.totalorder %v353, 1
  %vm358 = vcmp.ge.s32.totalorder %v354, 1
  %vm359 = vcmp.ge.s32.totalorder %v355, 1
  %v360 = vsel %vm356, 1, 0
  %v361 = vsel %vm357, 1, 0
  %v362 = vsel %vm358, 1, 0
  %v363 = vsel %vm359, 1, 0
  %v364 = vcvt.s32.f32 %v360
  %v365 = vcvt.s32.f32 %v361
  %v366 = vcvt.s32.f32 %v362
  %v367 = vcvt.s32.f32 %v363
  %vm368 = vcmp.lt.s32.totalorder %v352, 15
  %vm369 = vcmp.lt.s32.totalorder %v353, 15
  %vm370 = vcmp.lt.s32.totalorder %v354, 15
  %vm371 = vcmp.lt.s32.totalorder %v355, 15
  %v372 = vsel %vm368, 1, 0
  %v373 = vsel %vm369, 1, 0
  %v374 = vsel %vm370, 1, 0
  %v375 = vsel %vm371, 1, 0
  %v376 = vcvt.s32.f32 %v372
  %v377 = vcvt.s32.f32 %v373
  %v378 = vcvt.s32.f32 %v374
  %v379 = vcvt.s32.f32 %v375
  %v380 = vrot.slane %v235, 7
  %v381 = vrot.slane %v236, 7
  %v382 = vrot.slane %v237, 7
  %v383 = vrot.slane %v238, 7
  %vm384 = vcmp.lt.s32.totalorder %v304, 1
  %v385 = vsel %vm384, %v382, %v383
  %v386 = vsel %vm384, %v381, %v382
  %v387 = vsel %vm384, %v380, %v381
  %v388 = vsel %vm384, %v383, %v380
  %v389 = vmul.f32 %v388, %v364
  %v390 = vmul.f32 %v387, %v365
  %v391 = vmul.f32 %v386, %v366
  %v392 = vmul.f32 %v385, %v367
  %v393 = vadd.f32 %v267, %v389
  %v394 = vadd.f32 %v268, %v390
  %v395 = vadd.f32 %v269, %v391
  %v396 = vadd.f32 %v270, %v392
  %v397 = vrot.slane %v299, 1
  %v398 = vrot.slane %v300, 1
  %v399 = vrot.slane %v301, 1
  %v400 = vrot.slane %v302, 1
  %vm401 = vcmp.lt.s32.totalorder %v304, 7
  %v402 = vsel %vm401, %v399, %v400
  %v403 = vsel %vm401, %v398, %v399
  %v404 = vsel %vm401, %v397, %v398
  %v405 = vsel %vm401, %v400, %v397
  %v406 = vmul.f32 %v404, %v376
  %v407 = vmul.f32 %v403, %v377
  %v408 = vmul.f32 %v402, %v378
  %v409 = vmul.f32 %v405, %v379
  %v410 = vadd.f32 %v393, %v406
  %v411 = vadd.f32 %v394, %v407
  %v412 = vadd.f32 %v395, %v408
  %v413 = vadd.f32 %v396, %v409
  %v414 = vld [vmem:[%s5] sm:$0x1]
  %v416 = vlaneseq
  %v417 = vshrl.u32 %v416, 7
  %v418 = vsub.s32 0, %v417
  %v419 = vrot.slane %v414, %v418
  %v421 = vmul.f32 %v410, %v419
  %v422 = vmul.f32 %v411, %v419
  %v423 = vmul.f32 %v412, %v419
  %v424 = vmul.f32 %v413, %v419
  %v425 = vld [vmem:[%s6] sm:$0x1]
  %v427 = vlaneseq
  %v428 = vshrl.u32 %v427, 7
  %v429 = vsub.s32 0, %v428
  %v430 = vrot.slane %v425, %v429
  %v432 = vadd.f32 %v421, %v430
  %v433 = vadd.f32 %v422, %v430
  %v434 = vadd.f32 %v423, %v430
  %v435 = vadd.f32 %v424, %v430
  %v436 = vld [vmem:[%s7] sm:$0xff]
  %v437 = vld [vmem:[%s7 + $0x8] sm:$0xff]
  %v438 = vld [vmem:[%s7 + $0x10] sm:$0xff]
  %v439 = vld [vmem:[%s7 + $0x18] sm:$0xff]
  %v440 = vld [vmem:[%s7 + $0x20] sm:$0xff]
  %v441 = vld [vmem:[%s7 + $0x28] sm:$0xff]
  %v442 = vld [vmem:[%s7 + $0x30] sm:$0xff]
  %v443 = vld [vmem:[%s7 + $0x38] sm:$0xff]
  %v444 = vld [vmem:[%s7 + $0x40] sm:$0xff]
  %v445 = vld [vmem:[%s7 + $0x48] sm:$0xff]
  %v446 = vld [vmem:[%s7 + $0x50] sm:$0xff]
  %v447 = vld [vmem:[%s7 + $0x58] sm:$0xff]
  %v448 = vld [vmem:[%s7 + $0x60] sm:$0xff]
  %v449 = vld [vmem:[%s7 + $0x68] sm:$0xff]
  %v450 = vld [vmem:[%s7 + $0x70] sm:$0xff]
  %v451 = vld [vmem:[%s7 + $0x78] sm:$0xff]
  %v452 = vld [vmem:[%s7 + $0x80] sm:$0xff]
  %v453 = vld [vmem:[%s7 + $0x88] sm:$0xff]
  %v454 = vld [vmem:[%s7 + $0x90] sm:$0xff]
  %v455 = vld [vmem:[%s7 + $0x98] sm:$0xff]
  %v456 = vld [vmem:[%s7 + $0xa0] sm:$0xff]
  %v457 = vld [vmem:[%s7 + $0xa8] sm:$0xff]
  %v458 = vld [vmem:[%s7 + $0xb0] sm:$0xff]
  %v459 = vld [vmem:[%s7 + $0xb8] sm:$0xff]
  %v460 = vld [vmem:[%s7 + $0xc0] sm:$0xff]
  %v461 = vld [vmem:[%s7 + $0xc8] sm:$0xff]
  %v462 = vld [vmem:[%s7 + $0xd0] sm:$0xff]
  %v463 = vld [vmem:[%s7 + $0xd8] sm:$0xff]
  %v464 = vld [vmem:[%s7 + $0xe0] sm:$0xff]
  %v465 = vld [vmem:[%s7 + $0xe8] sm:$0xff]
  %v466 = vld [vmem:[%s7 + $0xf0] sm:$0xff]
  %v467 = vld [vmem:[%s7 + $0xf8] sm:$0xff]
  %468 = vmatprep.subr.mxu0 %v437
  %469 = vmatpush1.msra.mxu0 %v436
  %470 = vmatprep.subr.mxu0 %v439
  %471 = vmatpush1.msra.mxu0 %v438
  %472 = vmatprep.subr.mxu0 %v441
  %473 = vmatpush1.msra.mxu0 %v440
  %474 = vmatprep.subr.mxu0 %v443
  %475 = vmatpush1.msra.mxu0 %v442
  %476 = vmatprep.subr.mxu0 %v445
  %477 = vmatpush1.msra.mxu0 %v444
  %478 = vmatprep.subr.mxu0 %v447
  %479 = vmatpush1.msra.mxu0 %v446
  %480 = vmatprep.subr.mxu0 %v449
  %481 = vmatpush1.msra.mxu0 %v448
  %482 = vmatprep.subr.mxu0 %v451
  %483 = vmatpush1.msra.mxu0 %v450
  %484 = vmatprep.subr.mxu0 %v453
  %485 = vmatpush1.msra.mxu0 %v452
  %486 = vmatprep.subr.mxu0 %v455
  %487 = vmatpush1.msra.mxu0 %v454
  %488 = vmatprep.subr.mxu0 %v457
  %489 = vmatpush1.msra.mxu0 %v456
  %490 = vmatprep.subr.mxu0 %v459
  %491 = vmatpush1.msra.mxu0 %v458
  %492 = vmatprep.subr.mxu0 %v461
  %493 = vmatpush1.msra.mxu0 %v460
  %494 = vmatprep.subr.mxu0 %v463
  %495 = vmatpush1.msra.mxu0 %v462
  %496 = vmatprep.subr.mxu0 %v465
  %497 = vmatpush1.msra.mxu0 %v464
  %498 = vmatprep.subr.mxu0 %v467
  %499 = vmatpush1.msra.mxu0 %v466
  %500 = vmatprep.subr.mxu0 0.0
  %501 = vmatpush1.msra.mxu0 0.0
  %502 = vmatprep.subr.mxu0 0.0
  %503 = vmatpush1.msra.mxu0 0.0
  %504 = vmatprep.subr.mxu0 0.0
  %505 = vmatpush1.msra.mxu0 0.0
  %506 = vmatprep.subr.mxu0 0.0
  %507 = vmatpush1.msra.mxu0 0.0
  %508 = vmatprep.subr.mxu0 0.0
  %509 = vmatpush1.msra.mxu0 0.0
  %510 = vmatprep.subr.mxu0 0.0
  %511 = vmatpush1.msra.mxu0 0.0
  %512 = vmatprep.subr.mxu0 0.0
  %513 = vmatpush1.msra.mxu0 0.0
  %514 = vmatprep.subr.mxu0 0.0
  %515 = vmatpush1.msra.mxu0 0.0
  %516 = vmatprep.subr.mxu0 0.0
  %517 = vmatpush1.msra.mxu0 0.0
  %518 = vmatprep.subr.mxu0 0.0
  %519 = vmatpush1.msra.mxu0 0.0
  %520 = vmatprep.subr.mxu0 0.0
  %521 = vmatpush1.msra.mxu0 0.0
  %522 = vmatprep.subr.mxu0 0.0
  %523 = vmatpush1.msra.mxu0 0.0
  %524 = vmatprep.subr.mxu0 0.0
  %525 = vmatpush1.msra.mxu0 0.0
  %526 = vmatprep.subr.mxu0 0.0
  %527 = vmatpush1.msra.mxu0 0.0
  %528 = vmatprep.subr.mxu0 0.0
  %529 = vmatpush1.msra.mxu0 0.0
  %530 = vmatprep.subr.mxu0 0.0
  %531 = vmatpush1.msra.mxu0 0.0
  %532 = vmatprep.mubr.f32.mxu0 0.0
  %533 = vmatmul.mubr.f32.gmra.mrb[0].mxu0 %v432
  %v534 = vpop.f32.mrb[0].mxu0
  %v535 = vadd.f32 0.0, %v534
  %v536 = vpop.f32.mrb[0].mxu0
  %v537 = vadd.f32 0.0, %v536
  %538 = vmatprep.mubr.f32.mxu0 0.0
  %539 = vmatmul.mubr.f32.gmra.mrb[0].mxu0 %v433
  %v540 = vpop.f32.mrb[0].mxu0
  %v541 = vadd.f32 0.0, %v540
  %v542 = vpop.f32.mrb[0].mxu0
  %v543 = vadd.f32 0.0, %v542
  %544 = vmatprep.mubr.f32.mxu0 0.0
  %545 = vmatmul.mubr.f32.gmra.mrb[0].mxu0 %v434
  %v546 = vpop.f32.mrb[0].mxu0
  %v547 = vadd.f32 0.0, %v546
  %v548 = vpop.f32.mrb[0].mxu0
  %v549 = vadd.f32 0.0, %v548
  %550 = vmatprep.mubr.f32.mxu0 0.0
  %551 = vmatmul.mubr.f32.gmra.mrb[0].mxu0 %v435
  %v552 = vpop.f32.mrb[0].mxu0
  %v553 = vadd.f32 0.0, %v552
  %v554 = vpop.f32.mrb[0].mxu0
  %v555 = vadd.f32 0.0, %v554
  %556 = vdwg.mxu0
  %v557 = vld [vmem:[%s8] sm:$0x3]
  %v559 = vlaneseq
  %v560 = vshrl.u32 %v559, 7
  %v561 = vsub.s32 0, %v560
  %v562 = vrot.slane %v557, %v561
  %v563 = vlaneseq
  %v564 = vshrl.u32 %v563, 7
  %v565 = vsub.s32 1, %v564
  %v566 = vrot.slane %v557, %v565
  %v569 = vmul.f32 %v535, %v562
  %v570 = vmul.f32 %v537, %v566
  %v571 = vmul.f32 %v541, %v562
  %v572 = vmul.f32 %v543, %v566
  %v573 = vmul.f32 %v547, %v562
  %v574 = vmul.f32 %v549, %v566
  %v575 = vmul.f32 %v553, %v562
  %v576 = vmul.f32 %v555, %v566
  %v577 = vld [vmem:[%s9] sm:$0x3]
  %v579 = vlaneseq
  %v580 = vshrl.u32 %v579, 7
  %v581 = vsub.s32 0, %v580
  %v582 = vrot.slane %v577, %v581
  %v583 = vlaneseq
  %v584 = vshrl.u32 %v583, 7
  %v585 = vsub.s32 1, %v584
  %v586 = vrot.slane %v577, %v585
  %v589 = vadd.f32 %v569, %v582
  %v590 = vadd.f32 %v570, %v586
  %v591 = vadd.f32 %v571, %v582
  %v592 = vadd.f32 %v572, %v586
  %v593 = vadd.f32 %v573, %v582
  %v594 = vadd.f32 %v574, %v586
  %v595 = vadd.f32 %v575, %v582
  %v596 = vadd.f32 %v576, %v586
  %v597 = vmax.f32 %v589, 0.0
  %v598 = vmax.f32 %v590, 0.0
  %v599 = vmax.f32 %v591, 0.0
  %v600 = vmax.f32 %v592, 0.0
  %v601 = vmax.f32 %v593, 0.0
  %v602 = vmax.f32 %v594, 0.0
  %v603 = vmax.f32 %v595, 0.0
  %v604 = vmax.f32 %v596, 0.0
  %v605 = vld [vmem:[%s10] sm:$0xff]
  %v606 = vld [vmem:[%s10 + $0x8] sm:$0xff]
  %v607 = vld [vmem:[%s10 + $0x10] sm:$0xff]
  %v608 = vld [vmem:[%s10 + $0x18] sm:$0xff]
  %v609 = vld [vmem:[%s10 + $0x20] sm:$0xff]
  %v610 = vld [vmem:[%s10 + $0x28] sm:$0xff]
  %v611 = vld [vmem:[%s10 + $0x30] sm:$0xff]
  %v612 = vld [vmem:[%s10 + $0x38] sm:$0xff]
  %v613 = vld [vmem:[%s10 + $0x40] sm:$0xff]
  %v614 = vld [vmem:[%s10 + $0x48] sm:$0xff]
  %v615 = vld [vmem:[%s10 + $0x50] sm:$0xff]
  %v616 = vld [vmem:[%s10 + $0x58] sm:$0xff]
  %v617 = vld [vmem:[%s10 + $0x60] sm:$0xff]
  %v618 = vld [vmem:[%s10 + $0x68] sm:$0xff]
  %v619 = vld [vmem:[%s10 + $0x70] sm:$0xff]
  %v620 = vld [vmem:[%s10 + $0x78] sm:$0xff]
  %v621 = vld [vmem:[%s10 + $0x80] sm:$0xff]
  %v622 = vld [vmem:[%s10 + $0x88] sm:$0xff]
  %v623 = vld [vmem:[%s10 + $0x90] sm:$0xff]
  %v624 = vld [vmem:[%s10 + $0x98] sm:$0xff]
  %v625 = vld [vmem:[%s10 + $0xa0] sm:$0xff]
  %v626 = vld [vmem:[%s10 + $0xa8] sm:$0xff]
  %v627 = vld [vmem:[%s10 + $0xb0] sm:$0xff]
  %v628 = vld [vmem:[%s10 + $0xb8] sm:$0xff]
  %v629 = vld [vmem:[%s10 + $0xc0] sm:$0xff]
  %v630 = vld [vmem:[%s10 + $0xc8] sm:$0xff]
  %v631 = vld [vmem:[%s10 + $0xd0] sm:$0xff]
  %v632 = vld [vmem:[%s10 + $0xd8] sm:$0xff]
  %v633 = vld [vmem:[%s10 + $0xe0] sm:$0xff]
  %v634 = vld [vmem:[%s10 + $0xe8] sm:$0xff]
  %v635 = vld [vmem:[%s10 + $0xf0] sm:$0xff]
  %v636 = vld [vmem:[%s10 + $0xf8] sm:$0xff]
  %v637 = vld [vmem:[%s10 + $0x100] sm:$0xff]
  %v638 = vld [vmem:[%s10 + $0x108] sm:$0xff]
  %v639 = vld [vmem:[%s10 + $0x110] sm:$0xff]
  %v640 = vld [vmem:[%s10 + $0x118] sm:$0xff]
  %v641 = vld [vmem:[%s10 + $0x120] sm:$0xff]
  %v642 = vld [vmem:[%s10 + $0x128] sm:$0xff]
  %v643 = vld [vmem:[%s10 + $0x130] sm:$0xff]
  %v644 = vld [vmem:[%s10 + $0x138] sm:$0xff]
  %v645 = vld [vmem:[%s10 + $0x140] sm:$0xff]
  %v646 = vld [vmem:[%s10 + $0x148] sm:$0xff]
  %v647 = vld [vmem:[%s10 + $0x150] sm:$0xff]
  %v648 = vld [vmem:[%s10 + $0x158] sm:$0xff]
  %v649 = vld [vmem:[%s10 + $0x160] sm:$0xff]
  %v650 = vld [vmem:[%s10 + $0x168] sm:$0xff]
  %v651 = vld [vmem:[%s10 + $0x170] sm:$0xff]
  %v652 = vld [vmem:[%s10 + $0x178] sm:$0xff]
  %v653 = vld [vmem:[%s10 + $0x180] sm:$0xff]
  %v654 = vld [vmem:[%s10 + $0x188] sm:$0xff]
  %v655 = vld [vmem:[%s10 + $0x190] sm:$0xff]
  %v656 = vld [vmem:[%s10 + $0x198] sm:$0xff]
  %v657 = vld [vmem:[%s10 + $0x1a0] sm:$0xff]
  %v658 = vld [vmem:[%s10 + $0x1a8] sm:$0xff]
  %v659 = vld [vmem:[%s10 + $0x1b0] sm:$0xff]
  %v660 = vld [vmem:[%s10 + $0x1b8] sm:$0xff]
  %v661 = vld [vmem:[%s10 + $0x1c0] sm:$0xff]
  %v662 = vld [vmem:[%s10 + $0x1c8] sm:$0xff]
  %v663 = vld [vmem:[%s10 + $0x1d0] sm:$0xff]
  %v664 = vld [vmem:[%s10 + $0x1d8] sm:$0xff]
  %v665 = vld [vmem:[%s10 + $0x1e0] sm:$0xff]
  %v666 = vld [vmem:[%s10 + $0x1e8] sm:$0xff]
  %v667 = vld [vmem:[%s10 + $0x1f0] sm:$0xff]
  %v668 = vld [vmem:[%s10 + $0x1f8] sm:$0xff]
  %669 = vmatprep.subr.mxu0 %v606
  %670 = vmatpush1.msra.mxu0 %v605
  %671 = vmatprep.subr.mxu0 %v608
  %672 = vmatpush1.msra.mxu0 %v607
  %673 = vmatprep.subr.mxu0 %v610
  %674 = vmatpush1.msra.mxu0 %v609
  %675 = vmatprep.subr.mxu0 %v612
  %676 = vmatpush1.msra.mxu0 %v611
  %677 = vmatprep.subr.mxu0 %v614
  %678 = vmatpush1.msra.mxu0 %v613
  %679 = vmatprep.subr.mxu0 %v616
  %680 = vmatpush1.msra.mxu0 %v615
  %681 = vmatprep.subr.mxu0 %v618
  %682 = vmatpush1.msra.mxu0 %v617
  %683 = vmatprep.subr.mxu0 %v620
  %684 = vmatpush1.msra.mxu0 %v619
  %685 = vmatprep.subr.mxu0 %v622
  %686 = vmatpush1.msra.mxu0 %v621
  %687 = vmatprep.subr.mxu0 %v624
  %688 = vmatpush1.msra.mxu0 %v623
  %689 = vmatprep.subr.mxu0 %v626
  %690 = vmatpush1.msra.mxu0 %v625
  %691 = vmatprep.subr.mxu0 %v628
  %692 = vmatpush1.msra.mxu0 %v627
  %693 = vmatprep.subr.mxu0 %v630
  %694 = vmatpush1.msra.mxu0 %v629
  %695 = vmatprep.subr.mxu0 %v632
  %696 = vmatpush1.msra.mxu0 %v631
  %697 = vmatprep.subr.mxu0 %v634
  %698 = vmatpush1.msra.mxu0 %v633
  %699 = vmatprep.subr.mxu0 %v636
  %700 = vmatpush1.msra.mxu0 %v635
  %701 = vmatprep.subr.mxu0 %v638
  %702 = vmatpush1.msra.mxu0 %v637
  %703 = vmatprep.subr.mxu0 %v640
  %704 = vmatpush1.msra.mxu0 %v639
  %705 = vmatprep.subr.mxu0 %v642
  %706 = vmatpush1.msra.mxu0 %v641
  %707 = vmatprep.subr.mxu0 %v644
  %708 = vmatpush1.msra.mxu0 %v643
  %709 = vmatprep.subr.mxu0 %v646
  %710 = vmatpush1.msra.mxu0 %v645
  %711 = vmatprep.subr.mxu0 %v648
  %712 = vmatpush1.msra.mxu0 %v647
  %713 = vmatprep.subr.mxu0 %v650
  %714 = vmatpush1.msra.mxu0 %v649
  %715 = vmatprep.subr.mxu0 %v652
  %716 = vmatpush1.msra.mxu0 %v651
  %717 = vmatprep.subr.mxu0 %v654
  %718 = vmatpush1.msra.mxu0 %v653
  %719 = vmatprep.subr.mxu0 %v656
  %720 = vmatpush1.msra.mxu0 %v655
  %721 = vmatprep.subr.mxu0 %v658
  %722 = vmatpush1.msra.mxu0 %v657
  %723 = vmatprep.subr.mxu0 %v660
  %724 = vmatpush1.msra.mxu0 %v659
  %725 = vmatprep.subr.mxu0 %v662
  %726 = vmatpush1.msra.mxu0 %v661
  %727 = vmatprep.subr.mxu0 %v664
  %728 = vmatpush1.msra.mxu0 %v663
  %729 = vmatprep.subr.mxu0 %v666
  %730 = vmatpush1.msra.mxu0 %v665
  %731 = vmatprep.subr.mxu0 %v668
  %732 = vmatpush1.msra.mxu0 %v667
  %733 = vmatprep.mubr.f32.mxu0 %v39
  %734 = vmatmul.mubr.f32.gmra.mrb[0].mxu0 %v38
  %v735 = vpop.f32.mrb[0].mxu0
  %v736 = vadd.f32 0.0, %v735
  %v737 = vpop.f32.mrb[0].mxu0
  %v738 = vadd.f32 0.0, %v737
  %739 = vmatprep.mubr.f32.mxu0 %v41
  %740 = vmatmul.mubr.f32.gmra.mrb[0].mxu0 %v40
  %v741 = vpop.f32.mrb[0].mxu0
  %v742 = vadd.f32 0.0, %v741
  %v743 = vpop.f32.mrb[0].mxu0
  %v744 = vadd.f32 0.0, %v743
  %745 = vmatprep.mubr.f32.mxu0 %v43
  %746 = vmatmul.mubr.f32.gmra.mrb[0].mxu0 %v42
  %v747 = vpop.f32.mrb[0].mxu0
  %v748 = vadd.f32 0.0, %v747
  %v749 = vpop.f32.mrb[0].mxu0
  %v750 = vadd.f32 0.0, %v749
  %751 = vmatprep.mubr.f32.mxu0 %v45
  %752 = vmatmul.mubr.f32.gmra.mrb[0].mxu0 %v44
  %v753 = vpop.f32.mrb[0].mxu0
  %v754 = vadd.f32 0.0, %v753
  %v755 = vpop.f32.mrb[0].mxu0
  %v756 = vadd.f32 0.0, %v755
  %757 = vdwg.mxu0
  %v758 = vadd.f32 %v597, %v736
  %v759 = vadd.f32 %v598, %v738
  %v760 = vadd.f32 %v599, %v742
  %v761 = vadd.f32 %v600, %v744
  %v762 = vadd.f32 %v601, %v748
  %v763 = vadd.f32 %v602, %v750
  %v764 = vadd.f32 %v603, %v754
  %v765 = vadd.f32 %v604, %v756
  %766 = vst [vmem:[%s11] sm:$0xff] %v758
  %767 = vst [vmem:[%s11 + $0x8] sm:$0xff] %v759
  %768 = vst [vmem:[%s11 + $0x10] sm:$0xff] %v760
  %769 = vst [vmem:[%s11 + $0x18] sm:$0xff] %v761
  %770 = vst [vmem:[%s11 + $0x20] sm:$0xff] %v762
  %771 = vst [vmem:[%s11 + $0x28] sm:$0xff] %v763
  %772 = vst [vmem:[%s11 + $0x30] sm:$0xff] %v764
  %773 = vst [vmem:[%s11 + $0x38] sm:$0xff] %v765
  // Predicated region
  $region46: #{inverted_residual_stride1.1} parent=0 // pred_check
    _
  $region47: #{inverted_residual_stride1.1} parent=0 // pred_check_branch
    %775 = sbr.rel (0) target = $region49
  $region48: #{inverted_residual_stride1.1} parent=0 // pred_region
    _
  $region49: #{inverted_residual_stride1.1} parent=0 // pred_fallthru
    _
  // Predicated region
  $region50: #{inverted_residual_stride1.1} parent=0 // pred_check
    _
  $region51: #{inverted_residual_stride1.1} parent=0 // pred_check_branch
    %777 = sbr.rel (0) target = $region53
  $region52: #{inverted_residual_stride1.1} parent=0 // pred_region
    _
  $region53: #{inverted_residual_stride1.1} parent=0 // pred_fallthru
    _

</llo_original>
